<compile_context>
chip_gen: v5e
topology: v5e:2x2
jax: 0.10.0
libtpu: 0.0.40
codegen_flags: <defaults>
</compile_context>

<pallas_src>
import functools

import jax
import jax.numpy as jnp
import numpy as np
from jax.experimental import pallas as pl
from jax.experimental.pallas import tpu as pltpu

HIDDEN_DIM = 32
REF_DIM = 64
EPS = 1e-6
SCALES = (1.0, 0.5, 0.1)
LANES = 128
TM_MAX = 2048            # packed rows per block (2048 * 128 * 4B = 1 MiB of x)


def _round_up(n, m):
    return ((n + m - 1) // m) * m


# ----------------------------------------------------------------------------- kernel
def _fused_kernel(x_ref, pblk_ref, segm_ref, gamma_ref, beta_ref,
                  o_ref, ysum_ref, ysq_ref, *, n_valid, inv_h, inv_hm1, eps):
    """One (tm, W) packed-row tile: projection-stat accumulation + per-token norm.

    Each packed row holds W/H consecutive tokens laid out along the 128 lanes.
    """
    i = pl.program_id(0)
    tm = x_ref.shape[0]

    x = x_ref[...].astype(jnp.float32)                              # (tm, W)

    # Rows past the true row count (tail-tile over-run) must not pollute the stats
    # (and zeroing them also keeps the unused normalization rows finite).
    row = jax.lax.broadcasted_iota(jnp.int32, (tm, 1), 0) + i * tm
    xm = jnp.where(row < n_valid, x, 0.0)

    # ---- shared projection y = x @ blockdiag(projT); per-feature sum / sumsq -------
    y = jnp.dot(xm, pblk_ref[...], preferred_element_type=jnp.float32)  # (tm, pack*R)

    @pl.when(i == 0)
    def _():
        ysum_ref[...] = jnp.zeros_like(ysum_ref)
        ysq_ref[...] = jnp.zeros_like(ysq_ref)

    ysum_ref[...] += jnp.sum(y, axis=0, keepdims=True)
    ysq_ref[...] += jnp.sum(y * y, axis=0, keepdims=True)

    # ---- per-token normalization (torch.std default: unbiased) + affine ------------
    # segm is the (W, W) 0/1 matrix with ones inside each token's HxH diagonal block:
    # x @ segm reduces each 32-lane token segment AND broadcasts the result back to
    # its lanes in one MXU op (no cross-lane XLU work, no masked stores).
    segm = segm_ref[...]
    mean_b = jnp.dot(xm, segm, preferred_element_type=jnp.float32) * inv_h
    d = xm - mean_b
    var_b = jnp.dot(d * d, segm, preferred_element_type=jnp.float32) * inv_hm1
    std_b = jnp.maximum(jnp.sqrt(var_b), 10.0 * eps)                 # clamp(min=10*eps)
    o_ref[...] = ((d / (std_b + eps)) * gamma_ref[...] + beta_ref[...]).astype(o_ref.dtype)


# ----------------------------------------------------------------------------- wrapper
@jax.jit
def adaptive_bias_reflective_forward(x, params):
    B, S, H = x.shape
    R = params["proj"].shape[0]
    N = B * S

    pack = LANES // H if LANES % H == 0 else 1       # tokens per 128-lane row
    W = H * pack

    x2 = x.reshape(N, H)
    rem = (-N) % pack
    if rem:
        # TODO(synk): rare unaligned case (N % pack != 0) still pays one HBM copy.
        x2 = jnp.pad(x2, ((0, rem), (0, 0)))
    n_rows = (N + rem) // pack
    xp = x2.reshape(n_rows, W)                        # free, row-major contiguous

    tm = min(TM_MAX, _round_up(n_rows, 8))
    n_tiles = pl.cdiv(n_rows, tm)

    # Constant operands (constant block index -> loaded once, stay resident).
    projT = jnp.transpose(params["proj"]).astype(jnp.float32)              # (H, R)
    proj_blk = jnp.kron(jnp.eye(pack, dtype=jnp.float32), projT)           # (W, pack*R)
    lane = jnp.arange(W)
    segm = (lane[:, None] // H == lane[None, :] // H).astype(jnp.float32)  # (W, W)
    gamma_b = jnp.tile(params["gamma"].astype(jnp.float32), pack).reshape(1, W)
    beta_b = jnp.tile(params["beta"].astype(jnp.float32), pack).reshape(1, W)

    kernel = functools.partial(
        _fused_kernel, n_valid=n_rows, inv_h=1.0 / H, inv_hm1=1.0 / (H - 1), eps=EPS)

    out_p, ysum, ysq = pl.pallas_call(
        kernel,
        out_shape=(jax.ShapeDtypeStruct((n_rows, W), x.dtype),
                   jax.ShapeDtypeStruct((1, pack * R), jnp.float32),
                   jax.ShapeDtypeStruct((1, pack * R), jnp.float32)),
        grid_spec=pltpu.PrefetchScalarGridSpec(
            num_scalar_prefetch=0,
            grid=(n_tiles,),
            in_specs=[
                pl.BlockSpec((tm, W), lambda i: (i, 0)),             # x (packed rows)
                pl.BlockSpec((W, pack * R), lambda i: (0, 0)),       # blockdiag proj^T
                pl.BlockSpec((W, W), lambda i: (0, 0)),              # segment matrix
                pl.BlockSpec((1, W), lambda i: (0, 0)),              # gamma (tiled)
                pl.BlockSpec((1, W), lambda i: (0, 0)),              # beta (tiled)
            ],
            out_specs=[
                pl.BlockSpec((tm, W), lambda i: (i, 0)),             # normalized out
                pl.BlockSpec((1, pack * R), lambda i: (0, 0)),       # sum_y accumulator
                pl.BlockSpec((1, pack * R), lambda i: (0, 0)),       # sumsq_y accumulator
            ],
        ),
        compiler_params=pltpu.CompilerParams(
            dimension_semantics=("arbitrary",),
            vmem_limit_bytes=32 * 1024 * 1024),
    )(xp, proj_blk, segm, gamma_b, beta_b)

    # ---- KL epilogue: O(n_scales * R) vector math from the shared y-stats ----------
    sum_y = jnp.sum(ysum.reshape(pack, R), axis=0)            # fold token slots -> (R,)
    sumsq_y = jnp.sum(ysq.reshape(pack, R), axis=0)           # (R,)
    inv_n = 1.0 / N                                           # true token count
    mu_y = sum_y * inv_n
    var_y = jnp.maximum(sumsq_y * inv_n - mu_y * mu_y, 0.0)   # ddof=0; clamp cancellation
    sigma_y = jnp.sqrt(var_y)

    ref_mu = params["ref_mu"]
    ref_sigma = params["ref_sigma"]
    bias = params["proj_bias"]
    kls = []
    for idx, scale in enumerate(SCALES):                      # static Python floats
        g = scale * jax.nn.sigmoid(params["proj_weights"][idx])          # (R,)
        mu_s = g * mu_y + bias
        sigma_s = jnp.maximum(jnp.abs(g) * sigma_y, EPS)      # clamp(std, min=eps)
        kl = (jnp.log(sigma_s / ref_sigma + EPS)
              + (ref_sigma ** 2 + (ref_mu - mu_s) ** 2) / (2.0 * sigma_s ** 2)
              - 0.5)
        kls.append(jnp.mean(kl))
    kls = jnp.stack(kls)

    out = out_p.reshape(n_rows * pack, H)[:N].reshape(B, S, H)
    return out, kls


# ----------------------------------------------------------------------------- params
def init_params(key, hidden_dim, ref_dim, n_scales):
    proj_std = 1.0 / hidden_dim ** 0.5
    return {
        "gamma": jnp.ones((hidden_dim,), jnp.float32),
        "beta": jnp.zeros((hidden_dim,), jnp.float32),
        "proj": jax.random.normal(key, (ref_dim, hidden_dim), jnp.float32) * proj_std,
        "proj_bias": jnp.zeros((ref_dim,), jnp.float32),
        "proj_weights": jnp.ones((n_scales, ref_dim), jnp.float32),
        "ref_mu": jnp.zeros((ref_dim,), jnp.float32),
        "ref_sigma": jnp.ones((ref_dim,), jnp.float32),
    }


# ----------------------------------------------------------------------------- reference
def reference_forward(x, params):
    """Pure-JAX mirror of the PyTorch eval-mode forward (for correctness check)."""
    kls = []
    for i, scale in enumerate(SCALES):
        w = jax.nn.sigmoid(params["proj_weights"][i])
        wp = params["proj"] * w[:, None]
        xp = (x * scale) @ wp.T + params["proj_bias"]
        mu = xp.mean(axis=(0, 1), keepdims=True)
        sigma = jnp.maximum(jnp.std(xp, axis=(0, 1), ddof=0, keepdims=True), EPS)
        kl = (jnp.log(sigma / params["ref_sigma"] + EPS)
              + (params["ref_sigma"] ** 2 + (params["ref_mu"] - mu) ** 2)
              / (2.0 * sigma ** 2) - 0.5)
        kls.append(kl.mean())
    mean = x.mean(axis=-1, keepdims=True)
    std = jnp.maximum(jnp.std(x, axis=-1, ddof=1, keepdims=True), EPS * 10.0)
    out = (x - mean) / (std + EPS) * params["gamma"] + params["beta"]
    return out, jnp.stack(kls)


if __name__ == "__main__":
    key = jax.random.PRNGKey(0)
    kp, kb, kw, km, ks, kx1, kx2 = jax.random.split(key, 7)

    B, S, H, R = 2, 8, HIDDEN_DIM, REF_DIM
    params = init_params(kp, H, R, len(SCALES))
    # Perturb a few params away from the trivial (zeros/ones) init so the KL path is
    # exercised non-degenerately (init itself still mirrors the PyTorch module).
    params["proj_bias"] = 0.1 * jax.random.normal(kb, (R,), jnp.float32)
    params["proj_weights"] = jax.random.normal(kw, (len(SCALES), R), jnp.float32)
    params["ref_mu"] = 0.1 * jax.random.normal(km, (R,), jnp.float32)
    params["ref_sigma"] = 1.0 + 0.1 * jax.random.normal(ks, (R,), jnp.float32)

    # --- small canonical shape ---
    x = jax.random.normal(kx1, (B, S, H), jnp.float32)
    out, kls = jax.block_until_ready(adaptive_bias_reflective_forward(x, params))
    out_ref, kls_ref = reference_forward(x, params)
    np.testing.assert_allclose(np.asarray(out), np.asarray(out_ref), rtol=2e-3, atol=2e-3)
    np.testing.assert_allclose(np.asarray(kls), np.asarray(kls_ref), rtol=2e-3, atol=2e-3)

    # --- second shape: exercises the partial tail block + in-kernel stats masking ---
    x2 = jax.random.normal(kx2, (4, 515, H), jnp.float32)
    out2, kls2 = jax.block_until_ready(adaptive_bias_reflective_forward(x2, params))
    out2_ref, kls2_ref = reference_forward(x2, params)
    np.testing.assert_allclose(np.asarray(out2), np.asarray(out2_ref), rtol=2e-3, atol=2e-3)
    np.testing.assert_allclose(np.asarray(kls2), np.asarray(kls2_ref), rtol=2e-3, atol=2e-3)

    print("KERNEL_OK")
</pallas_src>

<mosaic_0001>
module attributes {stable_mosaic.version = 11 : i64} {
  func.func @_fused_kernel(%arg0: i32, %arg1: memref<8x128xf32, #tpu.memory_space<vmem>>, %arg2: memref<128x256xf32, #tpu.memory_space<vmem>>, %arg3: memref<128x128xf32, #tpu.memory_space<vmem>>, %arg4: memref<1x128xf32, #tpu.memory_space<vmem>>, %arg5: memref<1x128xf32, #tpu.memory_space<vmem>>, %arg6: memref<8x128xf32, #tpu.memory_space<vmem>>, %arg7: memref<1x256xf32, #tpu.memory_space<vmem>>, %arg8: memref<1x256xf32, #tpu.memory_space<vmem>>) attributes {dimension_semantics = [#tpu.dimension_semantics<arbitrary>], iteration_bounds = array<i64: 1>, scalar_prefetch = 0 : i64, scratch_operands = 0 : i64, tpu.core_type = #tpu.core_type<tc>, window_params = [{transform_indices = @transform_0, window_bounds = array<i64: 8, 128>}, {pipeline_mode = #tpu.pipeline_mode<synchronous>, transform_indices = @transform_1, window_bounds = array<i64: 128, 256>}, {pipeline_mode = #tpu.pipeline_mode<synchronous>, transform_indices = @transform_2, window_bounds = array<i64: 128, 128>}, {pipeline_mode = #tpu.pipeline_mode<synchronous>, transform_indices = @transform_3, window_bounds = array<i64: 1, 128>}, {pipeline_mode = #tpu.pipeline_mode<synchronous>, transform_indices = @transform_4, window_bounds = array<i64: 1, 128>}, {transform_indices = @transform_5, window_bounds = array<i64: 8, 128>}, {pipeline_mode = #tpu.pipeline_mode<synchronous>, transform_indices = @transform_6, window_bounds = array<i64: 1, 256>}, {pipeline_mode = #tpu.pipeline_mode<synchronous>, transform_indices = @transform_7, window_bounds = array<i64: 1, 256>}]} {
    %c0 = arith.constant 0 : index
    %c0_0 = arith.constant 0 : index
    %0 = vector.load %arg1[%c0, %c0_0] : memref<8x128xf32, #tpu.memory_space<vmem>>, vector<8x128xf32>
    %1 = tpu.iota {dimensions = array<i32: 0>} : vector<8x1xi32>
    %c8_i32 = arith.constant 8 : i32
    %2 = arith.muli %arg0, %c8_i32 : i32
    %3 = vector.broadcast %2 : i32 to vector<8x1xi32>
    %4 = arith.addi %1, %3 : vector<8x1xi32>
    %c4_i32 = arith.constant 4 : i32
    %5 = vector.broadcast %c4_i32 : i32 to vector<8x1xi32>
    %6 = arith.cmpi slt, %4, %5 : vector<8x1xi32>
    %cst = arith.constant 0.000000e+00 : f32
    %7 = vector.shape_cast %6 : vector<8x1xi1> to vector<8x1xi1>
    %8 = vector.broadcast %7 : vector<8x1xi1> to vector<8x128xi1>
    %9 = vector.broadcast %cst : f32 to vector<8x128xf32>
    %10 = arith.select %8, %0, %9 : vector<8x128xi1>, vector<8x128xf32>
    %c0_1 = arith.constant 0 : index
    %c0_2 = arith.constant 0 : index
    %11 = vector.load %arg2[%c0_1, %c0_2] : memref<128x256xf32, #tpu.memory_space<vmem>>, vector<128x256xf32>
    %cst_3 = arith.constant dense<0.000000e+00> : vector<8x256xf32>
    %12 = tpu.matmul %10, %11, %cst_3 {dimension_numbers = #tpu.dot_dimension_numbers<[1], [0], [0], [1], [0, 0, 1, 1], [], []>} : vector<8x128xf32>, vector<128x256xf32>, vector<8x256xf32> -> vector<8x256xf32>
    %c0_i32 = arith.constant 0 : i32
    %13 = arith.cmpi eq, %arg0, %c0_i32 : i32
    %14 = arith.extui %13 : i1 to i32
    %c0_i32_4 = arith.constant 0 : i32
    %15 = arith.cmpi ne, %14, %c0_i32_4 : i32
    scf.if %15 {
      %cst_29 = arith.constant 0.000000e+00 : f32
      %49 = vector.broadcast %cst_29 : f32 to vector<1x256xf32>
      %c0_30 = arith.constant 0 : index
      %c0_31 = arith.constant 0 : index
      %50 = vector.load %arg7[%c0_30, %c0_31] : memref<1x256xf32, #tpu.memory_space<vmem>>, vector<1x256xf32>
      tpu.vector_store %arg7[%c0_30, %c0_31], %49 {strides = array<i32>} : memref<1x256xf32, #tpu.memory_space<vmem>>, vector<1x256xf32>,
      %cst_32 = arith.constant 0.000000e+00 : f32
      %51 = vector.broadcast %cst_32 : f32 to vector<1x256xf32>
      %c0_33 = arith.constant 0 : index
      %c0_34 = arith.constant 0 : index
      %52 = vector.load %arg8[%c0_33, %c0_34] : memref<1x256xf32, #tpu.memory_space<vmem>>, vector<1x256xf32>
      tpu.vector_store %arg8[%c0_33, %c0_34], %51 {strides = array<i32>} : memref<1x256xf32, #tpu.memory_space<vmem>>, vector<1x256xf32>,
    } else {
    }
    %c0_5 = arith.constant 0 : index
    %c0_6 = arith.constant 0 : index
    %16 = vector.load %arg7[%c0_5, %c0_6] : memref<1x256xf32, #tpu.memory_space<vmem>>, vector<1x256xf32>
    %cst_7 = arith.constant dense<0.000000e+00> : vector<256xf32>
    %17 = vector.multi_reduction <add>, %12, %cst_7 [0] : vector<8x256xf32> to vector<256xf32>
    %18 = vector.shape_cast %17 : vector<256xf32> to vector<1x256xf32>
    %19 = arith.addf %16, %18 : vector<1x256xf32>
    %c0_8 = arith.constant 0 : index
    %c0_9 = arith.constant 0 : index
    %20 = vector.load %arg7[%c0_8, %c0_9] : memref<1x256xf32, #tpu.memory_space<vmem>>, vector<1x256xf32>
    tpu.vector_store %arg7[%c0_8, %c0_9], %19 {strides = array<i32>} : memref<1x256xf32, #tpu.memory_space<vmem>>, vector<1x256xf32>,
    %c0_10 = arith.constant 0 : index
    %c0_11 = arith.constant 0 : index
    %21 = vector.load %arg8[%c0_10, %c0_11] : memref<1x256xf32, #tpu.memory_space<vmem>>, vector<1x256xf32>
    %22 = arith.mulf %12, %12 : vector<8x256xf32>
    %cst_12 = arith.constant dense<0.000000e+00> : vector<256xf32>
    %23 = vector.multi_reduction <add>, %22, %cst_12 [0] : vector<8x256xf32> to vector<256xf32>
    %24 = vector.shape_cast %23 : vector<256xf32> to vector<1x256xf32>
    %25 = arith.addf %21, %24 : vector<1x256xf32>
    %c0_13 = arith.constant 0 : index
    %c0_14 = arith.constant 0 : index
    %26 = vector.load %arg8[%c0_13, %c0_14] : memref<1x256xf32, #tpu.memory_space<vmem>>, vector<1x256xf32>
    tpu.vector_store %arg8[%c0_13, %c0_14], %25 {strides = array<i32>} : memref<1x256xf32, #tpu.memory_space<vmem>>, vector<1x256xf32>,
    %c0_15 = arith.constant 0 : index
    %c0_16 = arith.constant 0 : index
    %27 = vector.load %arg3[%c0_15, %c0_16] : memref<128x128xf32, #tpu.memory_space<vmem>>, vector<128x128xf32>
    %cst_17 = arith.constant dense<0.000000e+00> : vector<8x128xf32>
    %28 = tpu.matmul %10, %27, %cst_17 {dimension_numbers = #tpu.dot_dimension_numbers<[1], [0], [0], [1], [0, 0, 1, 1], [], []>} : vector<8x128xf32>, vector<128x128xf32>, vector<8x128xf32> -> vector<8x128xf32>
    %cst_18 = arith.constant 3.125000e-02 : f32
    %29 = vector.broadcast %cst_18 : f32 to vector<8x128xf32>
    %30 = arith.mulf %28, %29 : vector<8x128xf32>
    %31 = arith.subf %10, %30 : vector<8x128xf32>
    %32 = arith.mulf %31, %31 : vector<8x128xf32>
    %cst_19 = arith.constant dense<0.000000e+00> : vector<8x128xf32>
    %33 = tpu.matmul %32, %27, %cst_19 {dimension_numbers = #tpu.dot_dimension_numbers<[1], [0], [0], [1], [0, 0, 1, 1], [], []>} : vector<8x128xf32>, vector<128x128xf32>, vector<8x128xf32> -> vector<8x128xf32>
    %cst_20 = arith.constant 0.0322580636 : f32
    %34 = vector.broadcast %cst_20 : f32 to vector<8x128xf32>
    %35 = arith.mulf %33, %34 : vector<8x128xf32>
    %36 = math.sqrt %35 : vector<8x128xf32>
    %cst_21 = arith.constant 9.99999974E-6 : f32
    %37 = vector.broadcast %cst_21 : f32 to vector<8x128xf32>
    %38 = arith.maximumf %36, %37 : vector<8x128xf32>
    %cst_22 = arith.constant 9.99999997E-7 : f32
    %39 = vector.broadcast %cst_22 : f32 to vector<8x128xf32>
    %40 = arith.addf %38, %39 : vector<8x128xf32>
    %41 = arith.divf %31, %40 : vector<8x128xf32>
    %c0_23 = arith.constant 0 : index
    %c0_24 = arith.constant 0 : index
    %42 = vector.load %arg4[%c0_23, %c0_24] : memref<1x128xf32, #tpu.memory_space<vmem>>, vector<1x128xf32>
    %43 = vector.broadcast %42 : vector<1x128xf32> to vector<8x128xf32>
    %44 = arith.mulf %41, %43 : vector<8x128xf32>
    %c0_25 = arith.constant 0 : index
    %c0_26 = arith.constant 0 : index
    %45 = vector.load %arg5[%c0_25, %c0_26] : memref<1x128xf32, #tpu.memory_space<vmem>>, vector<1x128xf32>
    %46 = vector.broadcast %45 : vector<1x128xf32> to vector<8x128xf32>
    %47 = arith.addf %44, %46 : vector<8x128xf32>
    %c0_27 = arith.constant 0 : index
    %c0_28 = arith.constant 0 : index
    %48 = vector.load %arg6[%c0_27, %c0_28] : memref<8x128xf32, #tpu.memory_space<vmem>>, vector<8x128xf32>
    tpu.vector_store %arg6[%c0_27, %c0_28], %47 {strides = array<i32>} : memref<8x128xf32, #tpu.memory_space<vmem>>, vector<8x128xf32>,
    return
  }
  func.func @transform_0(%arg0: i32) -> (i32, i32) {
    %c0_i32 = arith.constant 0 : i32
    %c0_i32_0 = arith.constant 0 : i32
    return %arg0, %c0_i32 : i32, i32
  }
  func.func @transform_1(%arg0: i32) -> (i32, i32) {
    %c0_i32 = arith.constant 0 : i32
    %c0_i32_0 = arith.constant 0 : i32
    %c0_i32_1 = arith.constant 0 : i32
    return %c0_i32, %c0_i32_0 : i32, i32
  }
  func.func @transform_2(%arg0: i32) -> (i32, i32) {
    %c0_i32 = arith.constant 0 : i32
    %c0_i32_0 = arith.constant 0 : i32
    %c0_i32_1 = arith.constant 0 : i32
    return %c0_i32, %c0_i32_0 : i32, i32
  }
  func.func @transform_3(%arg0: i32) -> (i32, i32) {
    %c0_i32 = arith.constant 0 : i32
    %c0_i32_0 = arith.constant 0 : i32
    %c0_i32_1 = arith.constant 0 : i32
    return %c0_i32, %c0_i32_0 : i32, i32
  }
  func.func @transform_4(%arg0: i32) -> (i32, i32) {
    %c0_i32 = arith.constant 0 : i32
    %c0_i32_0 = arith.constant 0 : i32
    %c0_i32_1 = arith.constant 0 : i32
    return %c0_i32, %c0_i32_0 : i32, i32
  }
  func.func @transform_5(%arg0: i32) -> (i32, i32) {
    %c0_i32 = arith.constant 0 : i32
    %c0_i32_0 = arith.constant 0 : i32
    return %arg0, %c0_i32 : i32, i32
  }
  func.func @transform_6(%arg0: i32) -> (i32, i32) {
    %c0_i32 = arith.constant 0 : i32
    %c0_i32_0 = arith.constant 0 : i32
    %c0_i32_1 = arith.constant 0 : i32
    return %c0_i32, %c0_i32_0 : i32, i32
  }
  func.func @transform_7(%arg0: i32) -> (i32, i32) {
    %c0_i32 = arith.constant 0 : i32
    %c0_i32_0 = arith.constant 0 : i32
    %c0_i32_1 = arith.constant 0 : i32
    return %c0_i32, %c0_i32_0 : i32, i32
  }
}

</mosaic_0001>

<llo_original>
// kernel: tile.13
$region0: #{tile.13}
  #allocation0 [shape = 's32[1]{0}', space=sflag, size = 0x4, scoped, tag = 'scoped memory for tile.13']
  %s0 = inlined_call_operand.vmem [shape: f32[32], index: 0, kind: input, shape index: {}]
  %s1 = inlined_call_operand.vmem [shape: f32[4,32], index: 1, kind: output, shape index: {}]
  // Predicated region
  $region2: #{tile.13} parent=0 // pred_check
    _
  $region3: #{tile.13} parent=0 // pred_check_branch
    %3 = sbr.rel (0) target = $region5
  $region4: #{tile.13} parent=0 // pred_region
    _
  $region5: #{tile.13} parent=0 // pred_fallthru
    _
  %v4 = vld [vmem:[%s0] ss:$0 sm:$0xff]
  %5 = vst [vmem:[%s1] sm:$0xf] %v4

// kernel: tile.14
$region0: #{tile.14}
  %s0 = inlined_call_operand.vmem [shape: f32[4,32], index: 0, kind: input, shape index: {}]
  %s1 = inlined_call_operand.vmem [shape: f32[1,128], index: 1, kind: output, shape index: {}]
  $region1: #{tile.14} parent=0
    #allocation0 [shape = 'u8[4096]{0}', space=vmem, size = 0x1000, scoped, tag = 'scoped mem for output reshape']
    #allocation1 [shape = 'u8[4096]{0}', space=vmem, size = 0x1000, scoped, tag = 'scoped mem for input reshape']
    %s3 = ssub.s32 16, 1
    %v4 = vld [vmem:[%s0] sm:%s3]
    %5 = vst [vmem:[#allocation1] sm:%s3] %v4
    %v6 = vld [vmem:[#allocation1] sm:$0x1]
    %vm7 = vcmask 261120
    %8 = vst.msk [vmem:[#allocation0] sm:$0x1] %vm7, %v6
    %s9 = scalar_lea.vmem [#allocation1], 3
    %v10 = vld [vmem:[%s9] sm:$0x1]
    %11 = vrot.lane.b32.xlu0 %v10, 96
    %v12 = vpop.permute.xlu0 %11
    %vm13 = vcmask 1048320
    %14 = vst.msk [vmem:[#allocation0] sm:$0x1] %vm13, %v12
    %s15 = scalar_lea.vmem [#allocation1], 2
    %v16 = vld [vmem:[%s15] sm:$0x1]
    %17 = vrot.lane.b32.xlu0 %v16, 64
    %v18 = vpop.permute.xlu0 %17
    %vm19 = vcmask 785920
    %20 = vst.msk [vmem:[#allocation0] sm:$0x1] %vm19, %v18
    %s21 = scalar_lea.vmem [#allocation1], 1
    %v22 = vld [vmem:[%s21] sm:$0x1]
    %23 = vrot.lane.b32.xlu0 %v22, 32
    %v24 = vpop.permute.xlu0 %23
    %vm25 = vcmask 523520
    %26 = vst.msk [vmem:[#allocation0] sm:$0x1] %vm25, %v24
    %s28 = ssub.s32 2, 1
    %v29 = vld [vmem:[#allocation0] sm:%s28]
    %s31 = ssub.s32 2, 1
    %32 = vst [vmem:[%s1] sm:%s31] %v29

// kernel: adaptive_bias_reflective_forward.1
$region0: #{adaptive_bias_reflective_forward.1}
  #allocation0 [shape = 'u32[]', space=smem, size = 0x4, offset = 0x4, fixed_abs, tag = 'smem constant byte address 0x4 - core index']
  #allocation1 [shape = 'u32[72,128]{1,0:T(1,128)}', space=vmem, size = 0x9000, scoped, tag = 'internal scratch']
  %s0 = inlined_call_operand.vmem [shape: f32[4,128], index: 0, kind: input, shape index: {}]
  %s1 = inlined_call_operand.vmem [shape: f32[128,256], index: 1, kind: input, shape index: {}]
  %s2 = inlined_call_operand.vmem [shape: f32[128,128], index: 2, kind: input, shape index: {}]
  %s3 = inlined_call_operand.vmem [shape: f32[1,128], index: 3, kind: input, shape index: {}]
  %s4 = inlined_call_operand.vmem [shape: f32[1,128], index: 4, kind: input, shape index: {}]
  %s5 = inlined_call_operand.vmem [shape: f32[4,128], index: 5, kind: output, shape index: {0}]
  %s6 = inlined_call_operand.vmem [shape: f32[1,256], index: 6, kind: output, shape index: {1}]
  %s7 = inlined_call_operand.vmem [shape: f32[1,256], index: 7, kind: output, shape index: {2}]
  %8 = xla_tuple %s5, %s6, %s7
  %s9 = sld [smem:[#allocation0]]
  $region80: #{adaptive_bias_reflective_forward.1} parent=0
    _
  %s11 = ssub.s32 1, %s9
  %s12 = scalar_select 0, %s11, %s9
  $region1: #{adaptive_bias_reflective_forward.1} parent=0
    #allocation2 [shape = 'u8[4096]{0}', space=vmem, size = 0x1000, scoped, tag = 'output window, operand 0, single buffered']
    // Predicated region
    $region2: #{adaptive_bias_reflective_forward.1} parent=1 // pred_check
      _
    $region3: #{adaptive_bias_reflective_forward.1} parent=1 // pred_check_branch
      %14 = sbr.rel (0) target = $region5
    $region4: #{adaptive_bias_reflective_forward.1} parent=1 // pred_region
      _
    $region5: #{adaptive_bias_reflective_forward.1} parent=1 // pred_fallthru
      _
    // Predicated region
    $region6: #{adaptive_bias_reflective_forward.1} parent=1 // pred_check
      _
    $region7: #{adaptive_bias_reflective_forward.1} parent=1 // pred_check_branch
      %16 = sbr.rel (0) target = $region9
    $region8: #{adaptive_bias_reflective_forward.1} parent=1 // pred_region
      _
    $region9: #{adaptive_bias_reflective_forward.1} parent=1 // pred_fallthru
      _
    // Predicated region
    $region10: #{adaptive_bias_reflective_forward.1} parent=1 // pred_check
      _
    $region11: #{adaptive_bias_reflective_forward.1} parent=1 // pred_check_branch
      %18 = sbr.rel (0) target = $region13
    $region12: #{adaptive_bias_reflective_forward.1} parent=1 // pred_region
      _
    $region13: #{adaptive_bias_reflective_forward.1} parent=1 // pred_fallthru
      _
    // Predicated region
    $region14: #{adaptive_bias_reflective_forward.1} parent=1 // pred_check
      _
    $region15: #{adaptive_bias_reflective_forward.1} parent=1 // pred_check_branch
      %20 = sbr.rel (0) target = $region17
    $region16: #{adaptive_bias_reflective_forward.1} parent=1 // pred_region
      _
    $region17: #{adaptive_bias_reflective_forward.1} parent=1 // pred_fallthru
      _
    // Predicated region
    $region18: #{adaptive_bias_reflective_forward.1} parent=1 // pred_check
      _
    $region19: #{adaptive_bias_reflective_forward.1} parent=1 // pred_check_branch
      %22 = sbr.rel (0) target = $region21
    $region20: #{adaptive_bias_reflective_forward.1} parent=1 // pred_region
      _
    $region21: #{adaptive_bias_reflective_forward.1} parent=1 // pred_fallthru
      _
    %v23 = vld [vmem:[%s0] sm:$0xff]
    %v24 = vlaneseq
    %v25 = vshrl.u32 %v24, 7
    %s26 = smul.u32 0, 8
    %v27 = vstv %s26
    %v28 = vadd.s32 %v25, %v27
    %vm29 = vcmp.lt.s32.totalorder %v28, 4
    %v30 = vsel %vm29, 1, 0
    %vm31 = vcmp.eq.s32.totalorder %v30, 1
    %v32 = vsel %vm31, %v23, 0.0
    %v33 = vld [vmem:[%s1] sm:$0xff]
    %v34 = vld [vmem:[%s1 + $0x8] sm:$0xff]
    %v35 = vld [vmem:[%s1 + $0x10] sm:$0xff]
    %v36 = vld [vmem:[%s1 + $0x18] sm:$0xff]
    %v37 = vld [vmem:[%s1 + $0x20] sm:$0xff]
    %v38 = vld [vmem:[%s1 + $0x28] sm:$0xff]
    %v39 = vld [vmem:[%s1 + $0x30] sm:$0xff]
    %v40 = vld [vmem:[%s1 + $0x38] sm:$0xff]
    %v41 = vld [vmem:[%s1 + $0x40] sm:$0xff]
    %v42 = vld [vmem:[%s1 + $0x48] sm:$0xff]
    %v43 = vld [vmem:[%s1 + $0x50] sm:$0xff]
    %v44 = vld [vmem:[%s1 + $0x58] sm:$0xff]
    %v45 = vld [vmem:[%s1 + $0x60] sm:$0xff]
    %v46 = vld [vmem:[%s1 + $0x68] sm:$0xff]
    %v47 = vld [vmem:[%s1 + $0x70] sm:$0xff]
    %v48 = vld [vmem:[%s1 + $0x78] sm:$0xff]
    %v49 = vld [vmem:[%s1 + $0x80] sm:$0xff]
    %v50 = vld [vmem:[%s1 + $0x88] sm:$0xff]
    %v51 = vld [vmem:[%s1 + $0x90] sm:$0xff]
    %v52 = vld [vmem:[%s1 + $0x98] sm:$0xff]
    %v53 = vld [vmem:[%s1 + $0xa0] sm:$0xff]
    %v54 = vld [vmem:[%s1 + $0xa8] sm:$0xff]
    %v55 = vld [vmem:[%s1 + $0xb0] sm:$0xff]
    %v56 = vld [vmem:[%s1 + $0xb8] sm:$0xff]
    %v57 = vld [vmem:[%s1 + $0xc0] sm:$0xff]
    %v58 = vld [vmem:[%s1 + $0xc8] sm:$0xff]
    %v59 = vld [vmem:[%s1 + $0xd0] sm:$0xff]
    %v60 = vld [vmem:[%s1 + $0xd8] sm:$0xff]
    %v61 = vld [vmem:[%s1 + $0xe0] sm:$0xff]
    %v62 = vld [vmem:[%s1 + $0xe8] sm:$0xff]
    %v63 = vld [vmem:[%s1 + $0xf0] sm:$0xff]
    %v64 = vld [vmem:[%s1 + $0xf8] sm:$0xff]
    %65 = vmatpush.msra.mxu0 %v63
    %66 = vmatpush.msra.mxu0 %v61
    %67 = vmatpush.msra.mxu0 %v59
    %68 = vmatpush.msra.mxu0 %v57
    %69 = vmatpush.msra.mxu0 %v55
    %70 = vmatpush.msra.mxu0 %v53
    %71 = vmatpush.msra.mxu0 %v51
    %72 = vmatpush.msra.mxu0 %v49
    %73 = vmatpush.msra.mxu0 %v47
    %74 = vmatpush.msra.mxu0 %v45
    %75 = vmatpush.msra.mxu0 %v43
    %76 = vmatpush.msra.mxu0 %v41
    %77 = vmatpush.msra.mxu0 %v39
    %78 = vmatpush.msra.mxu0 %v37
    %79 = vmatpush.msra.mxu0 %v35
    %80 = vmatpush.msra.mxu0 %v33
    %81 = vmatmul.f32.gmra.mxu0 %v32
    %v82 = vpop.f32.mrf.mxu0
    %v83 = vadd.f32 0.0, %v82
    %84 = vdwg.mxu0
    %85 = vmatpush.msra.mxu0 %v64
    %86 = vmatpush.msra.mxu0 %v62
    %87 = vmatpush.msra.mxu0 %v60
    %88 = vmatpush.msra.mxu0 %v58
    %89 = vmatpush.msra.mxu0 %v56
    %90 = vmatpush.msra.mxu0 %v54
    %91 = vmatpush.msra.mxu0 %v52
    %92 = vmatpush.msra.mxu0 %v50
    %93 = vmatpush.msra.mxu0 %v48
    %94 = vmatpush.msra.mxu0 %v46
    %95 = vmatpush.msra.mxu0 %v44
    %96 = vmatpush.msra.mxu0 %v42
    %97 = vmatpush.msra.mxu0 %v40
    %98 = vmatpush.msra.mxu0 %v38
    %99 = vmatpush.msra.mxu0 %v36
    %100 = vmatpush.msra.mxu0 %v34
    %101 = vmatmul.f32.gmra.mxu0 %v32
    %v102 = vpop.f32.mrf.mxu0
    %v103 = vadd.f32 0.0, %v102
    %104 = vdwg.mxu0
    %p105 = scmp.eq.s32.totalorder 0, 0
    // Predicated region
    $region22: #{adaptive_bias_reflective_forward.1} parent=1 // pred_check
      %p106 = pneg %p105
    $region23: #{adaptive_bias_reflective_forward.1} parent=1 // pred_check_branch
      %108 = sbr.rel (%p106) target = $region25
    $region24: #{adaptive_bias_reflective_forward.1} parent=1 // pred_region
      %v109 = vlaneseq
      %vm110 = vcmp.ge.s32.totalorder %v109, 0
      %vm111 = vcmp.lt.s32.totalorder %v109, 256
      %vm112 = vmand %vm110, %vm111
      %113 = vst.msk [vmem:[%s6] sm:$0x3] %vm112, 0.0
      %114 = vst.msk [vmem:[%s7] sm:$0x3] %vm112, 0.0
    $region25: #{adaptive_bias_reflective_forward.1} parent=1 // pred_fallthru
      _
    %v115 = vld [vmem:[%s6] sm:$0x3]
    %v116 = vrot.slane %v83, 4
    %v117 = vadd.f32 %v83, %v116
    %v118 = vrot.slane %v117, 2
    %v119 = vadd.f32 %v117, %v118
    %v120 = vrot.slane %v119, 1
    %v121 = vadd.f32 %v119, %v120
    %v122 = vrot.slane %v103, 4
    %v123 = vadd.f32 %v103, %v122
    %v124 = vrot.slane %v123, 2
    %v125 = vadd.f32 %v123, %v124
    %v126 = vrot.slane %v125, 1
    %v127 = vadd.f32 %v125, %v126
    %v130 = vrot.slane %v127, 7
    %vm131 = vcmask 1040384
    %v132 = vsel %vm131, %v121, %v130
    %v134 = vadd.f32 %v115, %v132
    %v135 = vlaneseq
    %vm136 = vcmp.ge.s32.totalorder %v135, 0
    %vm137 = vcmp.lt.s32.totalorder %v135, 256
    %vm138 = vmand %vm136, %vm137
    %139 = vst.msk [vmem:[%s6] sm:$0x3] %vm138, %v134
    %v140 = vld [vmem:[%s7] sm:$0x3]
    %v141 = vmul.f32 %v83, %v83
    %v142 = vmul.f32 %v103, %v103
    %v143 = vrot.slane %v141, 4
    %v144 = vadd.f32 %v141, %v143
    %v145 = vrot.slane %v144, 2
    %v146 = vadd.f32 %v144, %v145
    %v147 = vrot.slane %v146, 1
    %v148 = vadd.f32 %v146, %v147
    %v149 = vrot.slane %v142, 4
    %v150 = vadd.f32 %v142, %v149
    %v151 = vrot.slane %v150, 2
    %v152 = vadd.f32 %v150, %v151
    %v153 = vrot.slane %v152, 1
    %v154 = vadd.f32 %v152, %v153
    %v157 = vrot.slane %v154, 7
    %v158 = vsel %vm131, %v148, %v157
    %v160 = vadd.f32 %v140, %v158
    %161 = vst.msk [vmem:[%s7] sm:$0x3] %vm138, %v160
    %v162 = vld [vmem:[%s2] sm:$0xff]
    %v163 = vld [vmem:[%s2 + $0x8] sm:$0xff]
    %v164 = vld [vmem:[%s2 + $0x10] sm:$0xff]
    %v165 = vld [vmem:[%s2 + $0x18] sm:$0xff]
    %v166 = vld [vmem:[%s2 + $0x20] sm:$0xff]
    %v167 = vld [vmem:[%s2 + $0x28] sm:$0xff]
    %v168 = vld [vmem:[%s2 + $0x30] sm:$0xff]
    %v169 = vld [vmem:[%s2 + $0x38] sm:$0xff]
    %v170 = vld [vmem:[%s2 + $0x40] sm:$0xff]
    %v171 = vld [vmem:[%s2 + $0x48] sm:$0xff]
    %v172 = vld [vmem:[%s2 + $0x50] sm:$0xff]
    %v173 = vld [vmem:[%s2 + $0x58] sm:$0xff]
    %v174 = vld [vmem:[%s2 + $0x60] sm:$0xff]
    %v175 = vld [vmem:[%s2 + $0x68] sm:$0xff]
    %v176 = vld [vmem:[%s2 + $0x70] sm:$0xff]
    %v177 = vld [vmem:[%s2 + $0x78] sm:$0xff]
    %178 = vmatpush.msra.mxu0 %v177
    %179 = vmatpush.msra.mxu0 %v176
    %180 = vmatpush.msra.mxu0 %v175
    %181 = vmatpush.msra.mxu0 %v174
    %182 = vmatpush.msra.mxu0 %v173
    %183 = vmatpush.msra.mxu0 %v172
    %184 = vmatpush.msra.mxu0 %v171
    %185 = vmatpush.msra.mxu0 %v170
    %186 = vmatpush.msra.mxu0 %v169
    %187 = vmatpush.msra.mxu0 %v168
    %188 = vmatpush.msra.mxu0 %v167
    %189 = vmatpush.msra.mxu0 %v166
    %190 = vmatpush.msra.mxu0 %v165
    %191 = vmatpush.msra.mxu0 %v164
    %192 = vmatpush.msra.mxu0 %v163
    %193 = vmatpush.msra.mxu0 %v162
    %194 = vmatmul.f32.gmra.mxu0 %v32
    %v195 = vpop.f32.mrf.mxu0
    %v196 = vadd.f32 0.0, %v195
    %197 = vdwg.mxu0
    %v198 = vmul.f32 %v196, 0.03125
    %v199 = vsub.f32 %v32, %v198
    %v200 = vmul.f32 %v199, %v199
    %201 = vmatpush.msra.mxu0 %v177
    %202 = vmatpush.msra.mxu0 %v176
    %203 = vmatpush.msra.mxu0 %v175
    %204 = vmatpush.msra.mxu0 %v174
    %205 = vmatpush.msra.mxu0 %v173
    %206 = vmatpush.msra.mxu0 %v172
    %207 = vmatpush.msra.mxu0 %v171
    %208 = vmatpush.msra.mxu0 %v170
    %209 = vmatpush.msra.mxu0 %v169
    %210 = vmatpush.msra.mxu0 %v168
    %211 = vmatpush.msra.mxu0 %v167
    %212 = vmatpush.msra.mxu0 %v166
    %213 = vmatpush.msra.mxu0 %v165
    %214 = vmatpush.msra.mxu0 %v164
    %215 = vmatpush.msra.mxu0 %v163
    %216 = vmatpush.msra.mxu0 %v162
    %217 = vmatmul.f32.gmra.mxu0 %v200
    %v218 = vpop.f32.mrf.mxu0
    %v219 = vadd.f32 0.0, %v218
    %220 = vdwg.mxu0
    %v221 = vmul.f32 %v219, 0.032258064
    %v222 = vrsqrt.pop %v221
    %v223 = vmul.f32 %v222, %v221
    %v224 = vmul.f32 %v223, %v222
    %v225 = vmul.f32 0.5, %v224
    %v226 = vsub.f32 1.5, %v225
    %v227 = vmul.f32 %v222, %v226
    %v228 = vmul.f32 %v221, %v227
    %vm229 = vcmp.eq.f32.partialorder %v221, inf
    %v230 = vsel %vm229, %v221, %v228
    %vm231 = vcmp.eq.f32.partialorder %v221, 0.0
    %v232 = vand.u32 %v221, 2147483648
    %v233 = vsel %vm231, %v232, %v230
    %v234 = vmax.f32 %v233, 1e-05
    %v235 = vadd.f32 %v234, 1e-06
    %v236 = vrcp.pop %v235
    %v237 = vmul.f32 %v235, %v236
    %v238 = vsub.f32 1.0, %v237
    %v239 = vmul.f32 %v236, %v238
    %v240 = vadd.f32 %v236, %v239
    %vm241 = vweird.f32 %v235
    %vm242 = vweird.f32 %v236
    %vm243 = vmor %vm241, %vm242
    %v244 = vsel %vm243, %v236, %v240
    %v245 = vand.u32 2147483647, %v235
    %vm246 = vcmp.eq.f32.partialorder %v245, 8.507059e+37
    %v247 = vand.u32 %v235, 2147483648
    %v248 = vor.u32 1.1754944e-38, %v247
    %v249 = vsel %vm246, %v248, %v244
    %v250 = vmul.f32 %v199, %v249
    %v251 = vld [vmem:[%s3] sm:$0x1]
    %v253 = vperm.slane %v251, 0
    %v255 = vmul.f32 %v250, %v253
    %v256 = vld [vmem:[%s4] sm:$0x1]
    %v258 = vperm.slane %v256, 0
    %v260 = vadd.f32 %v255, %v258
    %261 = vst [vmem:[#allocation2] sm:$0xff] %v260
    // Predicated region
    $region26: #{adaptive_bias_reflective_forward.1} parent=1 // pred_check
      _
    $region27: #{adaptive_bias_reflective_forward.1} parent=1 // pred_check_branch
      %263 = sbr.rel (0) target = $region29
    $region28: #{adaptive_bias_reflective_forward.1} parent=1 // pred_region
      // Predicated region
      $region30: #{adaptive_bias_reflective_forward.1} parent=28 // pred_check
        _
      $region31: #{adaptive_bias_reflective_forward.1} parent=28 // pred_check_branch
        %265 = sbr.rel (0) target = $region33
      $region32: #{adaptive_bias_reflective_forward.1} parent=28 // pred_region
        // Predicated region
        $region34: #{adaptive_bias_reflective_forward.1} parent=32 // pred_check
          _
        $region35: #{adaptive_bias_reflective_forward.1} parent=32 // pred_check_branch
          %267 = sbr.rel target = $region37
        $region36: #{adaptive_bias_reflective_forward.1} parent=32 // pred_region
          // Predicated region
          $region49: #{adaptive_bias_reflective_forward.1} parent=36 // pred_check
            _
          $region50: #{adaptive_bias_reflective_forward.1} parent=36 // pred_check_branch
            %283 = sbr.rel (0) target = $region52
          $region51: #{adaptive_bias_reflective_forward.1} parent=36 // pred_region
            %s285 = ssub.s32 16, 1
            loop: start=0, step=1, limit=1
            $region53: #{adaptive_bias_reflective_forward.1} parent=51 // loop_pre_header
              _
            $region54: #{adaptive_bias_reflective_forward.1} parent=51 // loop_header
              %s287 = sphi 0, %s291
              %p288 = scmp.ge.s32.totalorder %s287, 1
              %s292 = sphi [#allocation2], [#allocation2]
              %s293 = sphi %s5, %s5
            $region55: #{adaptive_bias_reflective_forward.1} parent=51 // loop_header_branch
              %290 = sbr.rel (%p288) target = $region59
            $region56: #{adaptive_bias_reflective_forward.1} parent=51 // loop_body
              %v294 = vld [vmem:[%s292] sm:%s285]
              %295 = vst [vmem:[%s293] sm:%s285] %v294
            $region57: #{adaptive_bias_reflective_forward.1} parent=51 // loop_footer
              %s291 = sadd.s32 1, %s287
            $region58: #{adaptive_bias_reflective_forward.1} parent=51 // loop_footer_branch
              %286 = sbr.rel target = $region54
            $region59: #{adaptive_bias_reflective_forward.1} parent=51 // loop_exit
              _
          $region52: #{adaptive_bias_reflective_forward.1} parent=36 // pred_fallthru
            _
        $region37: #{adaptive_bias_reflective_forward.1} parent=32 // pred_fallthru
          _
        // Predicated region
        $region38: #{adaptive_bias_reflective_forward.1} parent=32 // pred_check
          _
        $region39: #{adaptive_bias_reflective_forward.1} parent=32 // pred_check_branch
          %269 = sbr.rel (0) target = $region41
        $region40: #{adaptive_bias_reflective_forward.1} parent=32 // pred_region
          %s271 = ssub.s32 16, 1
          loop: start=0, step=1, limit=1
          $region42: #{adaptive_bias_reflective_forward.1} parent=40 // loop_pre_header
            _
          $region43: #{adaptive_bias_reflective_forward.1} parent=40 // loop_header
            %s273 = sphi 0, %s277
            %p274 = scmp.ge.s32.totalorder %s273, 1
            %s278 = sphi [#allocation2], [#allocation2]
            %s279 = sphi %s5, %s5
          $region44: #{adaptive_bias_reflective_forward.1} parent=40 // loop_header_branch
            %276 = sbr.rel (%p274) target = $region48
          $region45: #{adaptive_bias_reflective_forward.1} parent=40 // loop_body
            %v280 = vld [vmem:[%s278] sm:%s271]
            %281 = vst [vmem:[%s279] sm:%s271] %v280
          $region46: #{adaptive_bias_reflective_forward.1} parent=40 // loop_footer
            %s277 = sadd.s32 1, %s273
          $region47: #{adaptive_bias_reflective_forward.1} parent=40 // loop_footer_branch
            %272 = sbr.rel target = $region43
          $region48: #{adaptive_bias_reflective_forward.1} parent=40 // loop_exit
            _
        $region41: #{adaptive_bias_reflective_forward.1} parent=32 // pred_fallthru
          _
      $region33: #{adaptive_bias_reflective_forward.1} parent=28 // pred_fallthru
        _
      %296 = vnop
    $region29: #{adaptive_bias_reflective_forward.1} parent=1 // pred_fallthru
      _
    // Predicated region
    $region60: #{adaptive_bias_reflective_forward.1} parent=1 // pred_check
      _
    $region61: #{adaptive_bias_reflective_forward.1} parent=1 // pred_check_branch
      %298 = sbr.rel (0) target = $region63
    $region62: #{adaptive_bias_reflective_forward.1} parent=1 // pred_region
      _
    $region63: #{adaptive_bias_reflective_forward.1} parent=1 // pred_fallthru
      _
    // Predicated region
    $region64: #{adaptive_bias_reflective_forward.1} parent=1 // pred_check
      _
    $region65: #{adaptive_bias_reflective_forward.1} parent=1 // pred_check_branch
      %300 = sbr.rel (0) target = $region67
    $region66: #{adaptive_bias_reflective_forward.1} parent=1 // pred_region
      _
    $region67: #{adaptive_bias_reflective_forward.1} parent=1 // pred_fallthru
      _
    // Predicated region
    $region68: #{adaptive_bias_reflective_forward.1} parent=1 // pred_check
      _
    $region69: #{adaptive_bias_reflective_forward.1} parent=1 // pred_check_branch
      %302 = sbr.rel (0) target = $region71
    $region70: #{adaptive_bias_reflective_forward.1} parent=1 // pred_region
      _
    $region71: #{adaptive_bias_reflective_forward.1} parent=1 // pred_fallthru
      _
    // Predicated region
    $region72: #{adaptive_bias_reflective_forward.1} parent=1 // pred_check
      _
    $region73: #{adaptive_bias_reflective_forward.1} parent=1 // pred_check_branch
      %304 = sbr.rel (0) target = $region75
    $region74: #{adaptive_bias_reflective_forward.1} parent=1 // pred_region
      _
    $region75: #{adaptive_bias_reflective_forward.1} parent=1 // pred_fallthru
      _
    // Predicated region
    $region76: #{adaptive_bias_reflective_forward.1} parent=1 // pred_check
      _
    $region77: #{adaptive_bias_reflective_forward.1} parent=1 // pred_check_branch
      %306 = sbr.rel (0) target = $region79
    $region78: #{adaptive_bias_reflective_forward.1} parent=1 // pred_region
      _
    $region79: #{adaptive_bias_reflective_forward.1} parent=1 // pred_fallthru
      _

</llo_original>
